<compile_context>
chip_gen: v6e
topology: v6e:2x2x1
jax: 0.10.0
libtpu: 0.0.40
codegen_flags: <defaults>
</compile_context>

<pallas_src>
import jax
import jax.numpy as jnp
from jax.experimental import pallas as pl
from jax.experimental.pallas import tpu as pltpu


def _round_up(a: int, b: int) -> int:
    return (a + b - 1) // b * b


def chat_model_kernel(x_ref, w1_ref, b1_ref, w2_ref, b2_ref, out_ref, acc_ref):
    """grid = (batch_tiles, k_tiles); K is the last (reduction) axis.

    x_ref  : (tm, tk)        bf16
    w1_ref : (tk, H_pad)     bf16
    b1_ref : (1, H_pad)      f32
    w2_ref : (H_pad, N_pad)  bf16 (resident across all grid steps)
    b2_ref : (1, N_pad)      f32
    out_ref: (tm, N_pad)     f32 (resident across the K axis)
    acc_ref: (tm, H_pad)     f32 VMEM scratch accumulator for fc1
    """
    k = pl.program_id(1)

    @pl.when(k == 0)
    def _():
        acc_ref[...] = jnp.zeros_like(acc_ref)

    # fc1 partial product on this K tile (MXU, bf16 in, f32 accumulate).
    acc_ref[...] += jnp.dot(
        x_ref[...], w1_ref[...], preferred_element_type=jnp.float32
    )

    @pl.when(k == pl.num_programs(1) - 1)
    def _():
        # Bias + ReLU in f32 on the VPU.
        h = jnp.maximum(acc_ref[...] + b1_ref[...], 0.0)
        # fc2: small resident weight, bf16 into the MXU, f32 accumulate.
        y = jnp.dot(
            h.astype(w2_ref.dtype), w2_ref[...], preferred_element_type=jnp.float32
        )
        out_ref[...] = (y + b2_ref[...]).astype(out_ref.dtype)


def chat_model_forward(x, w1, b1, w2, b2, *, tm=128, tk=512):
    """Forward pass of ChatModel.

    x : (B, input_size) f32
    w1: (input_size, hidden) f32   (PyTorch fc1.weight transposed to (in, out))
    b1: (hidden,) or (1, hidden) f32
    w2: (hidden, output_size) f32  (PyTorch fc2.weight transposed to (in, out))
    b2: (output_size,) or (1, output_size) f32
    Returns (B, output_size) f32.
    """
    B, K = x.shape
    H = w1.shape[1]
    N = w2.shape[1]

    # Lane-dense padding: feature dims up to multiples of 128.
    H_pad = _round_up(H, 128)
    N_pad = _round_up(N, 128)
    # K (vocab) tiling: pad to a multiple of the K tile.
    K_pad = _round_up(K, 128)
    tk = min(tk, K_pad)          # modest tk also keeps v7x's 64 MiB VMEM happy
    K_pad = _round_up(K_pad, tk)
    # Batch tiling: 128-row tiles for real batches, >=8 sublanes for tiny ones.
    tm_eff = tm if B >= tm else _round_up(max(B, 8), 8)
    B_pad = _round_up(B, tm_eff)

    # Zero-pad everything (zeros keep ReLU/fc2 of padded cols exactly zero) and
    # cast matmul operands to bf16 at the boundary; biases stay f32.
    xp = jnp.zeros((B_pad, K_pad), jnp.bfloat16).at[:B, :K].set(
        x.astype(jnp.bfloat16))
    w1p = jnp.zeros((K_pad, H_pad), jnp.bfloat16).at[:K, :H].set(
        w1.astype(jnp.bfloat16))
    b1p = jnp.zeros((1, H_pad), jnp.float32).at[0, :H].set(
        jnp.reshape(b1, (-1,)).astype(jnp.float32))
    w2p = jnp.zeros((H_pad, N_pad), jnp.bfloat16).at[:H, :N].set(
        w2.astype(jnp.bfloat16))
    b2p = jnp.zeros((1, N_pad), jnp.float32).at[0, :N].set(
        jnp.reshape(b2, (-1,)).astype(jnp.float32))

    grid = (B_pad // tm_eff, K_pad // tk)

    out_padded = pl.pallas_call(
        chat_model_kernel,
        out_shape=jax.ShapeDtypeStruct((B_pad, N_pad), jnp.float32),
        grid_spec=pltpu.PrefetchScalarGridSpec(
            num_scalar_prefetch=0,
            grid=grid,
            in_specs=[
                pl.BlockSpec((tm_eff, tk), lambda i, k: (i, k)),     # x tile
                pl.BlockSpec((tk, H_pad), lambda i, k: (k, 0)),      # w1 tile
                pl.BlockSpec((1, H_pad), lambda i, k: (0, 0)),       # b1 (resident)
                pl.BlockSpec((H_pad, N_pad), lambda i, k: (0, 0)),   # w2 (resident)
                pl.BlockSpec((1, N_pad), lambda i, k: (0, 0)),       # b2 (resident)
            ],
            out_specs=pl.BlockSpec((tm_eff, N_pad), lambda i, k: (i, 0)),
            scratch_shapes=[pltpu.VMEM((tm_eff, H_pad), jnp.float32)],
        ),
        compiler_params=pltpu.CompilerParams(
            # batch axis shards across TensorCores (v7x), K axis is a reduction.
            dimension_semantics=("parallel", "arbitrary"),
        ),
    )(xp, w1p, b1p, w2p, b2p)

    # Strip batch / output padding.
    return out_padded[:B, :N]


if __name__ == "__main__":
    # Small deterministic shapes consistent with the module: hidden_size=8 as
    # in the script; vocab (input_size) and label count (output_size) are
    # data-dependent in the original, so pick small fixed values.
    batch = 2
    input_size = 32
    hidden_size = 8
    output_size = 4

    key = jax.random.PRNGKey(0)
    kx, kw1, kb1, kw2, kb2 = jax.random.split(key, 5)

    x = jax.random.normal(kx, (batch, input_size), dtype=jnp.float32)

    # PyTorch nn.Linear-style uniform init, weights in (out, in) layout.
    bound1 = 1.0 / jnp.sqrt(jnp.float32(input_size))
    w1_t = jax.random.uniform(kw1, (hidden_size, input_size),
                              minval=-bound1, maxval=bound1, dtype=jnp.float32)
    b1 = jax.random.uniform(kb1, (hidden_size,),
                            minval=-bound1, maxval=bound1, dtype=jnp.float32)
    bound2 = 1.0 / jnp.sqrt(jnp.float32(hidden_size))
    w2_t = jax.random.uniform(kw2, (output_size, hidden_size),
                              minval=-bound2, maxval=bound2, dtype=jnp.float32)
    b2 = jax.random.uniform(kb2, (output_size,),
                            minval=-bound2, maxval=bound2, dtype=jnp.float32)

    # Transpose PyTorch (out, in) weights -> (in, out) for the kernel.
    w1 = w1_t.T
    w2 = w2_t.T

    fwd = jax.jit(chat_model_forward)
    out = jax.block_until_ready(fwd(x, w1, b1, w2, b2))

    # Reference mirroring the kernel's numerics (bf16 MXU operands, f32 accum).
    xb = x.astype(jnp.bfloat16).astype(jnp.float32)
    w1b = w1.astype(jnp.bfloat16).astype(jnp.float32)
    w2b = w2.astype(jnp.bfloat16).astype(jnp.float32)
    h_ref = jnp.maximum(xb @ w1b + b1[None, :], 0.0)
    ref = h_ref.astype(jnp.bfloat16).astype(jnp.float32) @ w2b + b2[None, :]

    assert out.shape == (batch, output_size)
    assert jnp.allclose(out, ref, atol=1e-3, rtol=1e-3), "mismatch vs reference"

    # Loose check against the pure-f32 forward (semantic sanity).
    ref_f32 = jnp.maximum(x @ w1 + b1[None, :], 0.0) @ w2 + b2[None, :]
    assert jnp.allclose(out, ref_f32, atol=5e-2, rtol=5e-2), "mismatch vs f32 reference"

    print("KERNEL_OK")
</pallas_src>

<mosaic_0001>
module attributes {stable_mosaic.version = 11 : i64} {
  func.func @chat_model_kernel(%arg0: i32, %arg1: i32, %arg2: memref<8x128xbf16, #tpu.memory_space<vmem>>, %arg3: memref<128x128xbf16, #tpu.memory_space<vmem>>, %arg4: memref<1x128xf32, #tpu.memory_space<vmem>>, %arg5: memref<128x128xbf16, #tpu.memory_space<vmem>>, %arg6: memref<1x128xf32, #tpu.memory_space<vmem>>, %arg7: memref<8x128xf32, #tpu.memory_space<vmem>>, %arg8: memref<8x128xf32, #tpu.memory_space<vmem>>) attributes {dimension_semantics = [#tpu.dimension_semantics<parallel>, #tpu.dimension_semantics<arbitrary>], iteration_bounds = array<i64: 1, 1>, scalar_prefetch = 0 : i64, scratch_operands = 1 : i64, tpu.core_type = #tpu.core_type<tc>, window_params = [{transform_indices = @transform_0, window_bounds = array<i64: 8, 128>}, {transform_indices = @transform_1, window_bounds = array<i64: 128, 128>}, {pipeline_mode = #tpu.pipeline_mode<synchronous>, transform_indices = @transform_2, window_bounds = array<i64: 1, 128>}, {pipeline_mode = #tpu.pipeline_mode<synchronous>, transform_indices = @transform_3, window_bounds = array<i64: 128, 128>}, {pipeline_mode = #tpu.pipeline_mode<synchronous>, transform_indices = @transform_4, window_bounds = array<i64: 1, 128>}, {transform_indices = @transform_5, window_bounds = array<i64: 8, 128>}]} {
    %c0_i32 = arith.constant 0 : i32
    %0 = arith.cmpi eq, %arg1, %c0_i32 : i32
    %1 = arith.extui %0 : i1 to i32
    %c0_i32_0 = arith.constant 0 : i32
    %2 = arith.cmpi ne, %1, %c0_i32_0 : i32
    scf.if %2 {
      %cst_10 = arith.constant 0.000000e+00 : f32
      %12 = vector.broadcast %cst_10 : f32 to vector<8x128xf32>
      %c0_11 = arith.constant 0 : index
      %c0_12 = arith.constant 0 : index
      %13 = vector.load %arg8[%c0_11, %c0_12] : memref<8x128xf32, #tpu.memory_space<vmem>>, vector<8x128xf32>
      tpu.vector_store %arg8[%c0_11, %c0_12], %12 {strides = array<i32>} : memref<8x128xf32, #tpu.memory_space<vmem>>, vector<8x128xf32>,
    } else {
    }
    %c0 = arith.constant 0 : index
    %c0_1 = arith.constant 0 : index
    %3 = vector.load %arg8[%c0, %c0_1] : memref<8x128xf32, #tpu.memory_space<vmem>>, vector<8x128xf32>
    %c0_2 = arith.constant 0 : index
    %c0_3 = arith.constant 0 : index
    %4 = vector.load %arg2[%c0_2, %c0_3] : memref<8x128xbf16, #tpu.memory_space<vmem>>, vector<8x128xbf16>
    %c0_4 = arith.constant 0 : index
    %c0_5 = arith.constant 0 : index
    %5 = vector.load %arg3[%c0_4, %c0_5] : memref<128x128xbf16, #tpu.memory_space<vmem>>, vector<128x128xbf16>
    %cst = arith.constant dense<0.000000e+00> : vector<8x128xf32>
    %6 = tpu.matmul %4, %5, %cst {dimension_numbers = #tpu.dot_dimension_numbers<[1], [0], [0], [1], [0, 0, 1, 1], [], []>} : vector<8x128xbf16>, vector<128x128xbf16>, vector<8x128xf32> -> vector<8x128xf32>
    %7 = arith.addf %3, %6 : vector<8x128xf32>
    %c0_6 = arith.constant 0 : index
    %c0_7 = arith.constant 0 : index
    %8 = vector.load %arg8[%c0_6, %c0_7] : memref<8x128xf32, #tpu.memory_space<vmem>>, vector<8x128xf32>
    tpu.vector_store %arg8[%c0_6, %c0_7], %7 {strides = array<i32>} : memref<8x128xf32, #tpu.memory_space<vmem>>, vector<8x128xf32>,
    %c0_i32_8 = arith.constant 0 : i32
    %9 = arith.cmpi eq, %arg1, %c0_i32_8 : i32
    %10 = arith.extui %9 : i1 to i32
    %c0_i32_9 = arith.constant 0 : i32
    %11 = arith.cmpi ne, %10, %c0_i32_9 : i32
    scf.if %11 {
      %c0_10 = arith.constant 0 : index
      %c0_11 = arith.constant 0 : index
      %12 = vector.load %arg8[%c0_10, %c0_11] : memref<8x128xf32, #tpu.memory_space<vmem>>, vector<8x128xf32>
      %c0_12 = arith.constant 0 : index
      %c0_13 = arith.constant 0 : index
      %13 = vector.load %arg4[%c0_12, %c0_13] : memref<1x128xf32, #tpu.memory_space<vmem>>, vector<1x128xf32>
      %14 = vector.broadcast %13 : vector<1x128xf32> to vector<8x128xf32>
      %15 = arith.addf %12, %14 : vector<8x128xf32>
      %cst_14 = arith.constant 0.000000e+00 : f32
      %16 = vector.broadcast %cst_14 : f32 to vector<8x128xf32>
      %17 = arith.maximumf %15, %16 : vector<8x128xf32>
      %18 = arith.truncf %17 : vector<8x128xf32> to vector<8x128xbf16>
      %c0_15 = arith.constant 0 : index
      %c0_16 = arith.constant 0 : index
      %19 = vector.load %arg5[%c0_15, %c0_16] : memref<128x128xbf16, #tpu.memory_space<vmem>>, vector<128x128xbf16>
      %cst_17 = arith.constant dense<0.000000e+00> : vector<8x128xf32>
      %20 = tpu.matmul %18, %19, %cst_17 {dimension_numbers = #tpu.dot_dimension_numbers<[1], [0], [0], [1], [0, 0, 1, 1], [], []>} : vector<8x128xbf16>, vector<128x128xbf16>, vector<8x128xf32> -> vector<8x128xf32>
      %c0_18 = arith.constant 0 : index
      %c0_19 = arith.constant 0 : index
      %21 = vector.load %arg6[%c0_18, %c0_19] : memref<1x128xf32, #tpu.memory_space<vmem>>, vector<1x128xf32>
      %22 = vector.broadcast %21 : vector<1x128xf32> to vector<8x128xf32>
      %23 = arith.addf %20, %22 : vector<8x128xf32>
      %c0_20 = arith.constant 0 : index
      %c0_21 = arith.constant 0 : index
      %24 = vector.load %arg7[%c0_20, %c0_21] : memref<8x128xf32, #tpu.memory_space<vmem>>, vector<8x128xf32>
      tpu.vector_store %arg7[%c0_20, %c0_21], %23 {strides = array<i32>} : memref<8x128xf32, #tpu.memory_space<vmem>>, vector<8x128xf32>,
    } else {
    }
    return
  }
  func.func @transform_0(%arg0: i32, %arg1: i32) -> (i32, i32) {
    %c0_i32 = arith.constant 0 : i32
    return %arg0, %arg1 : i32, i32
  }
  func.func @transform_1(%arg0: i32, %arg1: i32) -> (i32, i32) {
    %c0_i32 = arith.constant 0 : i32
    %c0_i32_0 = arith.constant 0 : i32
    return %arg1, %c0_i32 : i32, i32
  }
  func.func @transform_2(%arg0: i32, %arg1: i32) -> (i32, i32) {
    %c0_i32 = arith.constant 0 : i32
    %c0_i32_0 = arith.constant 0 : i32
    %c0_i32_1 = arith.constant 0 : i32
    return %c0_i32, %c0_i32_0 : i32, i32
  }
  func.func @transform_3(%arg0: i32, %arg1: i32) -> (i32, i32) {
    %c0_i32 = arith.constant 0 : i32
    %c0_i32_0 = arith.constant 0 : i32
    %c0_i32_1 = arith.constant 0 : i32
    return %c0_i32, %c0_i32_0 : i32, i32
  }
  func.func @transform_4(%arg0: i32, %arg1: i32) -> (i32, i32) {
    %c0_i32 = arith.constant 0 : i32
    %c0_i32_0 = arith.constant 0 : i32
    %c0_i32_1 = arith.constant 0 : i32
    return %c0_i32, %c0_i32_0 : i32, i32
  }
  func.func @transform_5(%arg0: i32, %arg1: i32) -> (i32, i32) {
    %c0_i32 = arith.constant 0 : i32
    %c0_i32_0 = arith.constant 0 : i32
    return %arg0, %c0_i32 : i32, i32
  }
}

</mosaic_0001>

<llo_original>
// kernel: chat_model_forward.1
$region0: #{chat_model_forward.1}
  #allocation0 [shape = 'u32[]', space=smem, size = 0x4, offset = 0x4, fixed_abs, tag = 'smem constant byte address 0x4 - core index']
  #allocation1 [shape = 'u32[144,128]{1,0:T(1,128)}', space=vmem, size = 0x12000, scoped, tag = 'internal scratch']
  #allocation2 [shape = 'f32[8,128]{1,0:T(8,128)}', space=vmem, size = 0x1000, scoped, tag = 'scratch operand']
  %s0 = inlined_call_operand.vmem [shape: bf16[8,128], index: 0, kind: input, shape index: {}]
  %s1 = inlined_call_operand.vmem [shape: bf16[128,128], index: 1, kind: input, shape index: {}]
  %s2 = inlined_call_operand.vmem [shape: f32[1,128], index: 2, kind: input, shape index: {}]
  %s3 = inlined_call_operand.vmem [shape: bf16[128,128], index: 3, kind: input, shape index: {}]
  %s4 = inlined_call_operand.vmem [shape: f32[1,128], index: 4, kind: input, shape index: {}]
  %s5 = inlined_call_operand.vmem [shape: f32[8,128], index: 5, kind: output, shape index: {}]
  %s6 = sld [smem:[#allocation0]]
  $region38: #{chat_model_forward.1} parent=0
    _
  %s8 = ssub.s32 1, %s6
  %s9 = scalar_select 0, %s8, %s6
  // Predicated region
  $region2: #{chat_model_forward.1} parent=0 // pred_check
    _
  $region3: #{chat_model_forward.1} parent=0 // pred_check_branch
    %11 = sbr.rel (0) target = $region5
  $region4: #{chat_model_forward.1} parent=0 // pred_region
    _
  $region5: #{chat_model_forward.1} parent=0 // pred_fallthru
    _
  // Predicated region
  $region6: #{chat_model_forward.1} parent=0 // pred_check
    _
  $region7: #{chat_model_forward.1} parent=0 // pred_check_branch
    %13 = sbr.rel (0) target = $region9
  $region8: #{chat_model_forward.1} parent=0 // pred_region
    _
  $region9: #{chat_model_forward.1} parent=0 // pred_fallthru
    _
  // Predicated region
  $region10: #{chat_model_forward.1} parent=0 // pred_check
    _
  $region11: #{chat_model_forward.1} parent=0 // pred_check_branch
    %15 = sbr.rel (0) target = $region13
  $region12: #{chat_model_forward.1} parent=0 // pred_region
    _
  $region13: #{chat_model_forward.1} parent=0 // pred_fallthru
    _
  // Predicated region
  $region14: #{chat_model_forward.1} parent=0 // pred_check
    _
  $region15: #{chat_model_forward.1} parent=0 // pred_check_branch
    %17 = sbr.rel (0) target = $region17
  $region16: #{chat_model_forward.1} parent=0 // pred_region
    _
  $region17: #{chat_model_forward.1} parent=0 // pred_fallthru
    _
  // Predicated region
  $region18: #{chat_model_forward.1} parent=0 // pred_check
    _
  $region19: #{chat_model_forward.1} parent=0 // pred_check_branch
    %19 = sbr.rel (0) target = $region21
  $region20: #{chat_model_forward.1} parent=0 // pred_region
    _
  $region21: #{chat_model_forward.1} parent=0 // pred_fallthru
    _
  %p21 = scmp.eq.s32.totalorder 0, 0
  // Predicated region
  $region22: #{chat_model_forward.1} parent=0 // pred_check
    %p22 = pneg %p21
  $region23: #{chat_model_forward.1} parent=0 // pred_check_branch
    %24 = sbr.rel (%p22) target = $region25
  $region24: #{chat_model_forward.1} parent=0 // pred_region
    %25 = vst [vmem:[#allocation2] sm:$0xff] 0.0
  $region25: #{chat_model_forward.1} parent=0 // pred_fallthru
    _
  %v26 = vld [vmem:[#allocation2] sm:$0xff]
  %v27 = vld [vmem:[%s0] sm:$0xf]
  %v28 = vld [vmem:[%s1] sm:$0xf]
  %v29 = vld [vmem:[%s1 + $0x4] sm:$0xf]
  %v30 = vld [vmem:[%s1 + $0x8] sm:$0xf]
  %v31 = vld [vmem:[%s1 + $0xc] sm:$0xf]
  %v32 = vld [vmem:[%s1 + $0x10] sm:$0xf]
  %v33 = vld [vmem:[%s1 + $0x14] sm:$0xf]
  %v34 = vld [vmem:[%s1 + $0x18] sm:$0xf]
  %v35 = vld [vmem:[%s1 + $0x1c] sm:$0xf]
  %v36 = vld [vmem:[%s1 + $0x20] sm:$0xf]
  %v37 = vld [vmem:[%s1 + $0x24] sm:$0xf]
  %v38 = vld [vmem:[%s1 + $0x28] sm:$0xf]
  %v39 = vld [vmem:[%s1 + $0x2c] sm:$0xf]
  %v40 = vld [vmem:[%s1 + $0x30] sm:$0xf]
  %v41 = vld [vmem:[%s1 + $0x34] sm:$0xf]
  %v42 = vld [vmem:[%s1 + $0x38] sm:$0xf]
  %v43 = vld [vmem:[%s1 + $0x3c] sm:$0xf]
  %v60 = vunpack.c.l.b16 %v28
  %v61 = vunpack.c.l.b16 %v29
  %v62 = vunpack.c.l.b16 %v30
  %v63 = vunpack.c.l.b16 %v31
  %v64 = vunpack.c.l.b16 %v32
  %v65 = vunpack.c.l.b16 %v33
  %v66 = vunpack.c.l.b16 %v34
  %v67 = vunpack.c.l.b16 %v35
  %v68 = vunpack.c.l.b16 %v36
  %v69 = vunpack.c.l.b16 %v37
  %v70 = vunpack.c.l.b16 %v38
  %v71 = vunpack.c.l.b16 %v39
  %v72 = vunpack.c.l.b16 %v40
  %v73 = vunpack.c.l.b16 %v41
  %v74 = vunpack.c.l.b16 %v42
  %v75 = vunpack.c.l.b16 %v43
  %v76 = vpack.c.b16 %v61, %v60
  %v77 = vpack.c.b16 %v63, %v62
  %v78 = vpack.c.b16 %v65, %v64
  %v79 = vpack.c.b16 %v67, %v66
  %v80 = vpack.c.b16 %v69, %v68
  %v81 = vpack.c.b16 %v71, %v70
  %v82 = vpack.c.b16 %v73, %v72
  %v83 = vpack.c.b16 %v75, %v74
  %92 = vmatprep.subr.bf16.mxu0 0
  %93 = vmatpush1.bf16.msra.mxu0 %v83
  %94 = vmatprep.subr.bf16.mxu0 0
  %95 = vmatpush1.bf16.msra.mxu0 %v82
  %96 = vmatprep.subr.bf16.mxu0 0
  %97 = vmatpush1.bf16.msra.mxu0 %v81
  %98 = vmatprep.subr.bf16.mxu0 0
  %99 = vmatpush1.bf16.msra.mxu0 %v80
  %100 = vmatprep.subr.bf16.mxu0 0
  %101 = vmatpush1.bf16.msra.mxu0 %v79
  %102 = vmatprep.subr.bf16.mxu0 0
  %103 = vmatpush1.bf16.msra.mxu0 %v78
  %104 = vmatprep.subr.bf16.mxu0 0
  %105 = vmatpush1.bf16.msra.mxu0 %v77
  %106 = vmatprep.subr.bf16.mxu0 0
  %107 = vmatpush1.bf16.msra.mxu0 %v76
  %108 = vmatprep.subr.bf16.mxu0 0
  %109 = vmatpush2.bf16.msra.mxu0 0
  %110 = vmatprep.subr.bf16.mxu0 0
  %111 = vmatpush2.bf16.msra.mxu0 0
  %112 = vmatprep.subr.bf16.mxu0 0
  %113 = vmatpush2.bf16.msra.mxu0 0
  %114 = vmatprep.subr.bf16.mxu0 0
  %115 = vmatpush2.bf16.msra.mxu0 0
  %116 = vmatprep.subr.bf16.mxu0 0
  %117 = vmatpush2.bf16.msra.mxu0 0
  %118 = vmatprep.subr.bf16.mxu0 0
  %119 = vmatpush2.bf16.msra.mxu0 0
  %120 = vmatprep.subr.bf16.mxu0 0
  %121 = vmatpush2.bf16.msra.mxu0 0
  %122 = vmatprep.subr.bf16.mxu0 0
  %123 = vmatpush2.bf16.msra.mxu0 0
  %124 = vmatprep.mubr.bf16.mxu0 0
  %125 = vmatmul.mubr.bf16.gmra.mxu0 %v27
  %v126 = vpop.f32.mrf.mxu0
  %v127 = vadd.f32 0.0, %v126
  %v128 = vpop.f32.mrf.mxu0
  %v129 = vpop.f32.mrf.mxu0
  %v130 = vpop.f32.mrf.mxu0
  %131 = vdwg.mxu0
  %v132 = vadd.f32 %v26, %v127
  %133 = vst [vmem:[#allocation2] sm:$0xff] %v132
  // Predicated region
  $region26: #{chat_model_forward.1} parent=0 // pred_check
    %p134 = pneg %p21
  $region27: #{chat_model_forward.1} parent=0 // pred_check_branch
    %136 = sbr.rel (%p134) target = $region29
  $region28: #{chat_model_forward.1} parent=0 // pred_region
    %v137 = vld [vmem:[#allocation2] sm:$0xff]
    %v138 = vld [vmem:[%s2] sm:$0x1]
    %v140 = vlaneseq
    %v141 = vshrl.u32 %v140, 7
    %v142 = vsub.s32 0, %v141
    %v143 = vrot.slane %v138, %v142
    %v145 = vadd.f32 %v137, %v143
    %v146 = vmax.f32 %v145, 0.0
    %v147 = vpack.c.bf16 %v146, %v146
    %v148 = vld [vmem:[%s3] sm:$0xf]
    %v149 = vld [vmem:[%s3 + $0x4] sm:$0xf]
    %v150 = vld [vmem:[%s3 + $0x8] sm:$0xf]
    %v151 = vld [vmem:[%s3 + $0xc] sm:$0xf]
    %v152 = vld [vmem:[%s3 + $0x10] sm:$0xf]
    %v153 = vld [vmem:[%s3 + $0x14] sm:$0xf]
    %v154 = vld [vmem:[%s3 + $0x18] sm:$0xf]
    %v155 = vld [vmem:[%s3 + $0x1c] sm:$0xf]
    %v156 = vld [vmem:[%s3 + $0x20] sm:$0xf]
    %v157 = vld [vmem:[%s3 + $0x24] sm:$0xf]
    %v158 = vld [vmem:[%s3 + $0x28] sm:$0xf]
    %v159 = vld [vmem:[%s3 + $0x2c] sm:$0xf]
    %v160 = vld [vmem:[%s3 + $0x30] sm:$0xf]
    %v161 = vld [vmem:[%s3 + $0x34] sm:$0xf]
    %v162 = vld [vmem:[%s3 + $0x38] sm:$0xf]
    %v163 = vld [vmem:[%s3 + $0x3c] sm:$0xf]
    %v164 = vld [vmem:[%s4] sm:$0x1]
    %v166 = vlaneseq
    %v167 = vshrl.u32 %v166, 7
    %v168 = vsub.s32 0, %v167
    %v169 = vrot.slane %v164, %v168
    %v187 = vunpack.c.l.b16 %v148
    %v188 = vunpack.c.l.b16 %v149
    %v189 = vunpack.c.l.b16 %v150
    %v190 = vunpack.c.l.b16 %v151
    %v191 = vunpack.c.l.b16 %v152
    %v192 = vunpack.c.l.b16 %v153
    %v193 = vunpack.c.l.b16 %v154
    %v194 = vunpack.c.l.b16 %v155
    %v195 = vunpack.c.l.b16 %v156
    %v196 = vunpack.c.l.b16 %v157
    %v197 = vunpack.c.l.b16 %v158
    %v198 = vunpack.c.l.b16 %v159
    %v199 = vunpack.c.l.b16 %v160
    %v200 = vunpack.c.l.b16 %v161
    %v201 = vunpack.c.l.b16 %v162
    %v202 = vunpack.c.l.b16 %v163
    %v203 = vpack.c.b16 %v188, %v187
    %v204 = vpack.c.b16 %v190, %v189
    %v205 = vpack.c.b16 %v192, %v191
    %v206 = vpack.c.b16 %v194, %v193
    %v207 = vpack.c.b16 %v196, %v195
    %v208 = vpack.c.b16 %v198, %v197
    %v209 = vpack.c.b16 %v200, %v199
    %v210 = vpack.c.b16 %v202, %v201
    %219 = vmatprep.subr.bf16.mxu0 0
    %220 = vmatpush1.bf16.msra.mxu0 %v210
    %221 = vmatprep.subr.bf16.mxu0 0
    %222 = vmatpush1.bf16.msra.mxu0 %v209
    %223 = vmatprep.subr.bf16.mxu0 0
    %224 = vmatpush1.bf16.msra.mxu0 %v208
    %225 = vmatprep.subr.bf16.mxu0 0
    %226 = vmatpush1.bf16.msra.mxu0 %v207
    %227 = vmatprep.subr.bf16.mxu0 0
    %228 = vmatpush1.bf16.msra.mxu0 %v206
    %229 = vmatprep.subr.bf16.mxu0 0
    %230 = vmatpush1.bf16.msra.mxu0 %v205
    %231 = vmatprep.subr.bf16.mxu0 0
    %232 = vmatpush1.bf16.msra.mxu0 %v204
    %233 = vmatprep.subr.bf16.mxu0 0
    %234 = vmatpush1.bf16.msra.mxu0 %v203
    %235 = vmatprep.subr.bf16.mxu0 0
    %236 = vmatpush2.bf16.msra.mxu0 0
    %237 = vmatprep.subr.bf16.mxu0 0
    %238 = vmatpush2.bf16.msra.mxu0 0
    %239 = vmatprep.subr.bf16.mxu0 0
    %240 = vmatpush2.bf16.msra.mxu0 0
    %241 = vmatprep.subr.bf16.mxu0 0
    %242 = vmatpush2.bf16.msra.mxu0 0
    %243 = vmatprep.subr.bf16.mxu0 0
    %244 = vmatpush2.bf16.msra.mxu0 0
    %245 = vmatprep.subr.bf16.mxu0 0
    %246 = vmatpush2.bf16.msra.mxu0 0
    %247 = vmatprep.subr.bf16.mxu0 0
    %248 = vmatpush2.bf16.msra.mxu0 0
    %249 = vmatprep.subr.bf16.mxu0 0
    %250 = vmatpush2.bf16.msra.mxu0 0
    %251 = vmatprep.mubr.bf16.mxu0 0
    %252 = vmatmul.mubr.bf16.gmra.mxu0 %v147
    %v253 = vpop.f32.mrf.mxu0
    %v254 = vadd.f32 %v169, %v253
    %v255 = vpop.f32.mrf.mxu0
    %v256 = vpop.f32.mrf.mxu0
    %v257 = vpop.f32.mrf.mxu0
    %258 = vdwg.mxu0
    %259 = vst [vmem:[%s5] sm:$0xff] %v254
  $region29: #{chat_model_forward.1} parent=0 // pred_fallthru
    _
  // Predicated region
  $region30: #{chat_model_forward.1} parent=0 // pred_check
    _
  $region31: #{chat_model_forward.1} parent=0 // pred_check_branch
    %261 = sbr.rel (0) target = $region33
  $region32: #{chat_model_forward.1} parent=0 // pred_region
    _
  $region33: #{chat_model_forward.1} parent=0 // pred_fallthru
    _
  // Predicated region
  $region34: #{chat_model_forward.1} parent=0 // pred_check
    _
  $region35: #{chat_model_forward.1} parent=0 // pred_check_branch
    %263 = sbr.rel (0) target = $region37
  $region36: #{chat_model_forward.1} parent=0 // pred_region
    _
  $region37: #{chat_model_forward.1} parent=0 // pred_fallthru
    _

</llo_original>
